<compile_context>
chip_gen: v6e
topology: v6e:2x2x1
jax: 0.10.0
libtpu: 0.0.40
codegen_flags: <defaults>
</compile_context>

<pallas_src>
import jax
import jax.numpy as jnp
from jax.experimental import pallas as pl
from jax.experimental.pallas import tpu as pltpu


def _pick_batch_tile(B, row_bytes, target_bytes=2 * 1024 * 1024, cap=64):
    """Batch rows per grid step.

    Must divide B and be either a multiple of 8 (sublane tile) or B itself
    (full dim) to satisfy the TPU (8,128) block rule.  Prefer blocks <= ~2 MiB
    and >= 2 grid steps so both TensorCores of a megacore get work."""
    cands = [d for d in range(1, B + 1) if B % d == 0 and (d % 8 == 0 or d == B)]
    good = [d for d in cands if d <= cap and d * row_bytes <= target_bytes]
    if good:
        multi = [d for d in good if 2 * d <= B]
        return max(multi) if multi else max(good)
    return min(cands)


def _pick_chunk(tb):
    """Lane-chunk width for the accumulation: keep tb*chunk f32 <= ~64 KiB so
    the accumulator stays resident in vregs; multiple of 128 lanes."""
    return max(128, min(2048, 128 * ((64 * 1024) // (tb * 4 * 128))))


def _make_dense_kernel(kernel_size, pad, L, C, L_dense, chunk, front_off):
    n_flat = L_dense * C
    inv_k = 1.0 / float(kernel_size)

    def kernel(x_ref, o_ref, xp_ref):
        # x_ref: (TB, L*C) input block, o_ref: (TB, L_dense*C) output block,
        # xp_ref: (TB, front_off + (L+2*pad)*C) f32 scratch holding the padded
        # sequence; front_off 128-aligns the bulk copy of x.

        # 1) Fused replicate padding: build x_padded once in VMEM.
        base = front_off + pad * C
        for start in range(0, L * C, chunk):
            w = min(chunk, L * C - start)
            xp_ref[:, pl.ds(base + start, w)] = (
                x_ref[:, pl.ds(start, w)].astype(jnp.float32))
        if pad > 0:
            first = x_ref[:, pl.ds(0, C)].astype(jnp.float32)
            last = x_ref[:, pl.ds((L - 1) * C, C)].astype(jnp.float32)
            for p in range(pad):
                xp_ref[:, pl.ds(front_off + p * C, C)] = first
                xp_ref[:, pl.ds(front_off + (pad + L + p) * C, C)] = last

        # 2) k-tap moving sum, chunked along the flat (time*channel) lane axis
        #    so the f32 accumulator lives in vregs; taps unrolled innermost.
        for start in range(0, n_flat, chunk):
            w = min(chunk, n_flat - start)
            acc = xp_ref[:, pl.ds(front_off + start, w)]
            for j in range(1, kernel_size):
                acc = acc + xp_ref[:, pl.ds(front_off + j * C + start, w)]
            o_ref[:, pl.ds(start, w)] = (acc * inv_k).astype(o_ref.dtype)

    return kernel


def moving_avg_pallas(x, kernel_size: int, stride: int):
    """Equivalent of the PyTorch moving_avg module forward pass.

    x: (B, L, C).  Returns (B, L_out, C) with
    L_out = (L + 2*((kernel_size-1)//2) - kernel_size) // stride + 1.
    """
    B, L, C = x.shape
    pad = (kernel_size - 1) // 2
    L_pad = L + 2 * pad
    L_dense = L_pad - kernel_size + 1                    # stride-1 pooled length
    itemsize = x.dtype.itemsize

    TB = _pick_batch_tile(B, L * C * itemsize)
    chunk = _pick_chunk(TB)
    front_off = (-pad * C) % 128
    scratch_len = front_off + L_pad * C

    xf = x.reshape(B, L * C)                             # free reshape (row-major)

    in_block = TB * L * C * itemsize
    out_block = TB * L_dense * C * itemsize
    scratch_bytes = TB * scratch_len * 4
    vmem_limit = max(32 * 1024 * 1024,
                     2 * in_block + 2 * out_block + scratch_bytes + (4 << 20))

    kernel = _make_dense_kernel(kernel_size, pad, L, C, L_dense, chunk, front_off)

    dense_flat = pl.pallas_call(
        kernel,
        out_shape=jax.ShapeDtypeStruct((B, L_dense * C), x.dtype),
        grid=(B // TB,),
        in_specs=[pl.BlockSpec((TB, L * C), lambda b: (b, 0))],
        out_specs=pl.BlockSpec((TB, L_dense * C), lambda b: (b, 0)),
        scratch_shapes=[pltpu.VMEM((TB, scratch_len), jnp.float32)],
        compiler_params=pltpu.CompilerParams(
            dimension_semantics=("parallel",),
            vmem_limit_bytes=int(vmem_limit),
        ),
        cost_estimate=pl.CostEstimate(
            flops=B * L_dense * C * kernel_size,
            transcendentals=0,
            bytes_accessed=(B * L * C + B * L_dense * C) * itemsize,
        ),
    )(xf)

    dense = dense_flat.reshape(B, L_dense, C)            # free reshape
    if stride == 1:
        return dense
    # Rare path (module default use is stride=1): subsample the dense pooled
    # output instead of using strided sublane loads in-kernel.
    return dense[:, ::stride, :]


def moving_avg_ref(x, kernel_size: int, stride: int):
    """Pure-JAX reference matching the PyTorch module exactly."""
    pad = (kernel_size - 1) // 2
    front = jnp.repeat(x[:, 0:1, :], pad, axis=1)
    end = jnp.repeat(x[:, -1:, :], pad, axis=1)
    xp = jnp.concatenate([front, x, end], axis=1)
    L_pad = xp.shape[1]
    L_out = (L_pad - kernel_size) // stride + 1
    cols = [jnp.mean(xp[:, t * stride:t * stride + kernel_size, :], axis=1)
            for t in range(L_out)]
    return jnp.stack(cols, axis=1)


if __name__ == "__main__":
    key0, key1 = jax.random.split(jax.random.PRNGKey(0))

    # Test 1: classic DLinear/Autoformer configuration (odd kernel, stride 1).
    B, L, C = 16, 48, 16
    x1 = jax.random.normal(key0, (B, L, C), dtype=jnp.float32)
    out1 = jax.block_until_ready(moving_avg_pallas(x1, kernel_size=25, stride=1))
    ref1 = moving_avg_ref(x1, kernel_size=25, stride=1)
    assert out1.shape == ref1.shape, (out1.shape, ref1.shape)
    assert jnp.allclose(out1, ref1, atol=1e-5, rtol=1e-5), "stride=1 mismatch"

    # Test 2: even kernel size and stride > 1.
    x2 = jax.random.normal(key1, (2, 8, 32), dtype=jnp.float32)
    out2 = jax.block_until_ready(moving_avg_pallas(x2, kernel_size=4, stride=2))
    ref2 = moving_avg_ref(x2, kernel_size=4, stride=2)
    assert out2.shape == ref2.shape, (out2.shape, ref2.shape)
    assert jnp.allclose(out2, ref2, atol=1e-5, rtol=1e-5), "stride=2 mismatch"

    print("KERNEL_OK")
</pallas_src>

<mosaic_0001>
module attributes {stable_mosaic.version = 11 : i64} {
  func.func @kernel(%arg0: i32, %arg1: memref<8x768xf32, #tpu.memory_space<vmem>>, %arg2: memref<8x768xf32, #tpu.memory_space<vmem>>, %arg3: memref<8x1216xf32, #tpu.memory_space<vmem>>) attributes {dimension_semantics = [#tpu.dimension_semantics<parallel>], iteration_bounds = array<i64: 2>, scalar_prefetch = 0 : i64, scratch_operands = 1 : i64, tpu.core_type = #tpu.core_type<tc>, window_params = [{transform_indices = @transform_0, window_bounds = array<i64: 8, 768>}, {transform_indices = @transform_1, window_bounds = array<i64: 8, 768>}]} {
    %c0 = arith.constant 0 : index
    %c0_0 = arith.constant 0 : index
    %0 = vector.load %arg1[%c0, %c0_0] : memref<8x768xf32, #tpu.memory_space<vmem>>, vector<8x768xf32>
    %c0_1 = arith.constant 0 : index
    %c256 = arith.constant 256 : index
    %1 = vector.load %arg3[%c0_1, %c256] : memref<8x1216xf32, #tpu.memory_space<vmem>>, vector<8x768xf32>
    tpu.vector_store %arg3[%c0_1, %c256], %0 {strides = array<i32>} : memref<8x1216xf32, #tpu.memory_space<vmem>>, vector<8x768xf32>,
    %c0_2 = arith.constant 0 : index
    %c0_3 = arith.constant 0 : index
    %2 = vector.load %arg1[%c0_2, %c0_3] : memref<8x768xf32, #tpu.memory_space<vmem>>, vector<8x16xf32>
    %c0_4 = arith.constant 0 : index
    %c752 = arith.constant 752 : index
    %3 = vector.load %arg1[%c0_4, %c752] : memref<8x768xf32, #tpu.memory_space<vmem>>, vector<8x16xf32>
    %c0_5 = arith.constant 0 : index
    %c64 = arith.constant 64 : index
    %4 = vector.load %arg3[%c0_5, %c64] : memref<8x1216xf32, #tpu.memory_space<vmem>>, vector<8x16xf32>
    tpu.vector_store %arg3[%c0_5, %c64], %2 {strides = array<i32>} : memref<8x1216xf32, #tpu.memory_space<vmem>>, vector<8x16xf32>,
    %c0_6 = arith.constant 0 : index
    %c1024 = arith.constant 1024 : index
    %5 = vector.load %arg3[%c0_6, %c1024] : memref<8x1216xf32, #tpu.memory_space<vmem>>, vector<8x16xf32>
    tpu.vector_store %arg3[%c0_6, %c1024], %3 {strides = array<i32>} : memref<8x1216xf32, #tpu.memory_space<vmem>>, vector<8x16xf32>,
    %c0_7 = arith.constant 0 : index
    %c80 = arith.constant 80 : index
    %6 = vector.load %arg3[%c0_7, %c80] : memref<8x1216xf32, #tpu.memory_space<vmem>>, vector<8x16xf32>
    tpu.vector_store %arg3[%c0_7, %c80], %2 {strides = array<i32>} : memref<8x1216xf32, #tpu.memory_space<vmem>>, vector<8x16xf32>,
    %c0_8 = arith.constant 0 : index
    %c1040 = arith.constant 1040 : index
    %7 = vector.load %arg3[%c0_8, %c1040] : memref<8x1216xf32, #tpu.memory_space<vmem>>, vector<8x16xf32>
    tpu.vector_store %arg3[%c0_8, %c1040], %3 {strides = array<i32>} : memref<8x1216xf32, #tpu.memory_space<vmem>>, vector<8x16xf32>,
    %c0_9 = arith.constant 0 : index
    %c96 = arith.constant 96 : index
    %8 = vector.load %arg3[%c0_9, %c96] : memref<8x1216xf32, #tpu.memory_space<vmem>>, vector<8x16xf32>
    tpu.vector_store %arg3[%c0_9, %c96], %2 {strides = array<i32>} : memref<8x1216xf32, #tpu.memory_space<vmem>>, vector<8x16xf32>,
    %c0_10 = arith.constant 0 : index
    %c1056 = arith.constant 1056 : index
    %9 = vector.load %arg3[%c0_10, %c1056] : memref<8x1216xf32, #tpu.memory_space<vmem>>, vector<8x16xf32>
    tpu.vector_store %arg3[%c0_10, %c1056], %3 {strides = array<i32>} : memref<8x1216xf32, #tpu.memory_space<vmem>>, vector<8x16xf32>,
    %c0_11 = arith.constant 0 : index
    %c112 = arith.constant 112 : index
    %10 = vector.load %arg3[%c0_11, %c112] : memref<8x1216xf32, #tpu.memory_space<vmem>>, vector<8x16xf32>
    tpu.vector_store %arg3[%c0_11, %c112], %2 {strides = array<i32>} : memref<8x1216xf32, #tpu.memory_space<vmem>>, vector<8x16xf32>,
    %c0_12 = arith.constant 0 : index
    %c1072 = arith.constant 1072 : index
    %11 = vector.load %arg3[%c0_12, %c1072] : memref<8x1216xf32, #tpu.memory_space<vmem>>, vector<8x16xf32>
    tpu.vector_store %arg3[%c0_12, %c1072], %3 {strides = array<i32>} : memref<8x1216xf32, #tpu.memory_space<vmem>>, vector<8x16xf32>,
    %c0_13 = arith.constant 0 : index
    %c128 = arith.constant 128 : index
    %12 = vector.load %arg3[%c0_13, %c128] : memref<8x1216xf32, #tpu.memory_space<vmem>>, vector<8x16xf32>
    tpu.vector_store %arg3[%c0_13, %c128], %2 {strides = array<i32>} : memref<8x1216xf32, #tpu.memory_space<vmem>>, vector<8x16xf32>,
    %c0_14 = arith.constant 0 : index
    %c1088 = arith.constant 1088 : index
    %13 = vector.load %arg3[%c0_14, %c1088] : memref<8x1216xf32, #tpu.memory_space<vmem>>, vector<8x16xf32>
    tpu.vector_store %arg3[%c0_14, %c1088], %3 {strides = array<i32>} : memref<8x1216xf32, #tpu.memory_space<vmem>>, vector<8x16xf32>,
    %c0_15 = arith.constant 0 : index
    %c144 = arith.constant 144 : index
    %14 = vector.load %arg3[%c0_15, %c144] : memref<8x1216xf32, #tpu.memory_space<vmem>>, vector<8x16xf32>
    tpu.vector_store %arg3[%c0_15, %c144], %2 {strides = array<i32>} : memref<8x1216xf32, #tpu.memory_space<vmem>>, vector<8x16xf32>,
    %c0_16 = arith.constant 0 : index
    %c1104 = arith.constant 1104 : index
    %15 = vector.load %arg3[%c0_16, %c1104] : memref<8x1216xf32, #tpu.memory_space<vmem>>, vector<8x16xf32>
    tpu.vector_store %arg3[%c0_16, %c1104], %3 {strides = array<i32>} : memref<8x1216xf32, #tpu.memory_space<vmem>>, vector<8x16xf32>,
    %c0_17 = arith.constant 0 : index
    %c160 = arith.constant 160 : index
    %16 = vector.load %arg3[%c0_17, %c160] : memref<8x1216xf32, #tpu.memory_space<vmem>>, vector<8x16xf32>
    tpu.vector_store %arg3[%c0_17, %c160], %2 {strides = array<i32>} : memref<8x1216xf32, #tpu.memory_space<vmem>>, vector<8x16xf32>,
    %c0_18 = arith.constant 0 : index
    %c1120 = arith.constant 1120 : index
    %17 = vector.load %arg3[%c0_18, %c1120] : memref<8x1216xf32, #tpu.memory_space<vmem>>, vector<8x16xf32>
    tpu.vector_store %arg3[%c0_18, %c1120], %3 {strides = array<i32>} : memref<8x1216xf32, #tpu.memory_space<vmem>>, vector<8x16xf32>,
    %c0_19 = arith.constant 0 : index
    %c176 = arith.constant 176 : index
    %18 = vector.load %arg3[%c0_19, %c176] : memref<8x1216xf32, #tpu.memory_space<vmem>>, vector<8x16xf32>
    tpu.vector_store %arg3[%c0_19, %c176], %2 {strides = array<i32>} : memref<8x1216xf32, #tpu.memory_space<vmem>>, vector<8x16xf32>,
    %c0_20 = arith.constant 0 : index
    %c1136 = arith.constant 1136 : index
    %19 = vector.load %arg3[%c0_20, %c1136] : memref<8x1216xf32, #tpu.memory_space<vmem>>, vector<8x16xf32>
    tpu.vector_store %arg3[%c0_20, %c1136], %3 {strides = array<i32>} : memref<8x1216xf32, #tpu.memory_space<vmem>>, vector<8x16xf32>,
    %c0_21 = arith.constant 0 : index
    %c192 = arith.constant 192 : index
    %20 = vector.load %arg3[%c0_21, %c192] : memref<8x1216xf32, #tpu.memory_space<vmem>>, vector<8x16xf32>
    tpu.vector_store %arg3[%c0_21, %c192], %2 {strides = array<i32>} : memref<8x1216xf32, #tpu.memory_space<vmem>>, vector<8x16xf32>,
    %c0_22 = arith.constant 0 : index
    %c1152 = arith.constant 1152 : index
    %21 = vector.load %arg3[%c0_22, %c1152] : memref<8x1216xf32, #tpu.memory_space<vmem>>, vector<8x16xf32>
    tpu.vector_store %arg3[%c0_22, %c1152], %3 {strides = array<i32>} : memref<8x1216xf32, #tpu.memory_space<vmem>>, vector<8x16xf32>,
    %c0_23 = arith.constant 0 : index
    %c208 = arith.constant 208 : index
    %22 = vector.load %arg3[%c0_23, %c208] : memref<8x1216xf32, #tpu.memory_space<vmem>>, vector<8x16xf32>
    tpu.vector_store %arg3[%c0_23, %c208], %2 {strides = array<i32>} : memref<8x1216xf32, #tpu.memory_space<vmem>>, vector<8x16xf32>,
    %c0_24 = arith.constant 0 : index
    %c1168 = arith.constant 1168 : index
    %23 = vector.load %arg3[%c0_24, %c1168] : memref<8x1216xf32, #tpu.memory_space<vmem>>, vector<8x16xf32>
    tpu.vector_store %arg3[%c0_24, %c1168], %3 {strides = array<i32>} : memref<8x1216xf32, #tpu.memory_space<vmem>>, vector<8x16xf32>,
    %c0_25 = arith.constant 0 : index
    %c224 = arith.constant 224 : index
    %24 = vector.load %arg3[%c0_25, %c224] : memref<8x1216xf32, #tpu.memory_space<vmem>>, vector<8x16xf32>
    tpu.vector_store %arg3[%c0_25, %c224], %2 {strides = array<i32>} : memref<8x1216xf32, #tpu.memory_space<vmem>>, vector<8x16xf32>,
    %c0_26 = arith.constant 0 : index
    %c1184 = arith.constant 1184 : index
    %25 = vector.load %arg3[%c0_26, %c1184] : memref<8x1216xf32, #tpu.memory_space<vmem>>, vector<8x16xf32>
    tpu.vector_store %arg3[%c0_26, %c1184], %3 {strides = array<i32>} : memref<8x1216xf32, #tpu.memory_space<vmem>>, vector<8x16xf32>,
    %c0_27 = arith.constant 0 : index
    %c240 = arith.constant 240 : index
    %26 = vector.load %arg3[%c0_27, %c240] : memref<8x1216xf32, #tpu.memory_space<vmem>>, vector<8x16xf32>
    tpu.vector_store %arg3[%c0_27, %c240], %2 {strides = array<i32>} : memref<8x1216xf32, #tpu.memory_space<vmem>>, vector<8x16xf32>,
    %c0_28 = arith.constant 0 : index
    %c1200 = arith.constant 1200 : index
    %27 = vector.load %arg3[%c0_28, %c1200] : memref<8x1216xf32, #tpu.memory_space<vmem>>, vector<8x16xf32>
    tpu.vector_store %arg3[%c0_28, %c1200], %3 {strides = array<i32>} : memref<8x1216xf32, #tpu.memory_space<vmem>>, vector<8x16xf32>,
    %c0_29 = arith.constant 0 : index
    %c64_30 = arith.constant 64 : index
    %28 = vector.load %arg3[%c0_29, %c64_30] : memref<8x1216xf32, #tpu.memory_space<vmem>>, vector<8x768xf32>
    %c0_31 = arith.constant 0 : index
    %c80_32 = arith.constant 80 : index
    %29 = vector.load %arg3[%c0_31, %c80_32] : memref<8x1216xf32, #tpu.memory_space<vmem>>, vector<8x768xf32>
    %30 = arith.addf %28, %29 : vector<8x768xf32>
    %c0_33 = arith.constant 0 : index
    %c96_34 = arith.constant 96 : index
    %31 = vector.load %arg3[%c0_33, %c96_34] : memref<8x1216xf32, #tpu.memory_space<vmem>>, vector<8x768xf32>
    %32 = arith.addf %30, %31 : vector<8x768xf32>
    %c0_35 = arith.constant 0 : index
    %c112_36 = arith.constant 112 : index
    %33 = vector.load %arg3[%c0_35, %c112_36] : memref<8x1216xf32, #tpu.memory_space<vmem>>, vector<8x768xf32>
    %34 = arith.addf %32, %33 : vector<8x768xf32>
    %c0_37 = arith.constant 0 : index
    %c128_38 = arith.constant 128 : index
    %35 = vector.load %arg3[%c0_37, %c128_38] : memref<8x1216xf32, #tpu.memory_space<vmem>>, vector<8x768xf32>
    %36 = arith.addf %34, %35 : vector<8x768xf32>
    %c0_39 = arith.constant 0 : index
    %c144_40 = arith.constant 144 : index
    %37 = vector.load %arg3[%c0_39, %c144_40] : memref<8x1216xf32, #tpu.memory_space<vmem>>, vector<8x768xf32>
    %38 = arith.addf %36, %37 : vector<8x768xf32>
    %c0_41 = arith.constant 0 : index
    %c160_42 = arith.constant 160 : index
    %39 = vector.load %arg3[%c0_41, %c160_42] : memref<8x1216xf32, #tpu.memory_space<vmem>>, vector<8x768xf32>
    %40 = arith.addf %38, %39 : vector<8x768xf32>
    %c0_43 = arith.constant 0 : index
    %c176_44 = arith.constant 176 : index
    %41 = vector.load %arg3[%c0_43, %c176_44] : memref<8x1216xf32, #tpu.memory_space<vmem>>, vector<8x768xf32>
    %42 = arith.addf %40, %41 : vector<8x768xf32>
    %c0_45 = arith.constant 0 : index
    %c192_46 = arith.constant 192 : index
    %43 = vector.load %arg3[%c0_45, %c192_46] : memref<8x1216xf32, #tpu.memory_space<vmem>>, vector<8x768xf32>
    %44 = arith.addf %42, %43 : vector<8x768xf32>
    %c0_47 = arith.constant 0 : index
    %c208_48 = arith.constant 208 : index
    %45 = vector.load %arg3[%c0_47, %c208_48] : memref<8x1216xf32, #tpu.memory_space<vmem>>, vector<8x768xf32>
    %46 = arith.addf %44, %45 : vector<8x768xf32>
    %c0_49 = arith.constant 0 : index
    %c224_50 = arith.constant 224 : index
    %47 = vector.load %arg3[%c0_49, %c224_50] : memref<8x1216xf32, #tpu.memory_space<vmem>>, vector<8x768xf32>
    %48 = arith.addf %46, %47 : vector<8x768xf32>
    %c0_51 = arith.constant 0 : index
    %c240_52 = arith.constant 240 : index
    %49 = vector.load %arg3[%c0_51, %c240_52] : memref<8x1216xf32, #tpu.memory_space<vmem>>, vector<8x768xf32>
    %50 = arith.addf %48, %49 : vector<8x768xf32>
    %c0_53 = arith.constant 0 : index
    %c256_54 = arith.constant 256 : index
    %51 = vector.load %arg3[%c0_53, %c256_54] : memref<8x1216xf32, #tpu.memory_space<vmem>>, vector<8x768xf32>
    %52 = arith.addf %50, %51 : vector<8x768xf32>
    %c0_55 = arith.constant 0 : index
    %c272 = arith.constant 272 : index
    %53 = vector.load %arg3[%c0_55, %c272] : memref<8x1216xf32, #tpu.memory_space<vmem>>, vector<8x768xf32>
    %54 = arith.addf %52, %53 : vector<8x768xf32>
    %c0_56 = arith.constant 0 : index
    %c288 = arith.constant 288 : index
    %55 = vector.load %arg3[%c0_56, %c288] : memref<8x1216xf32, #tpu.memory_space<vmem>>, vector<8x768xf32>
    %56 = arith.addf %54, %55 : vector<8x768xf32>
    %c0_57 = arith.constant 0 : index
    %c304 = arith.constant 304 : index
    %57 = vector.load %arg3[%c0_57, %c304] : memref<8x1216xf32, #tpu.memory_space<vmem>>, vector<8x768xf32>
    %58 = arith.addf %56, %57 : vector<8x768xf32>
    %c0_58 = arith.constant 0 : index
    %c320 = arith.constant 320 : index
    %59 = vector.load %arg3[%c0_58, %c320] : memref<8x1216xf32, #tpu.memory_space<vmem>>, vector<8x768xf32>
    %60 = arith.addf %58, %59 : vector<8x768xf32>
    %c0_59 = arith.constant 0 : index
    %c336 = arith.constant 336 : index
    %61 = vector.load %arg3[%c0_59, %c336] : memref<8x1216xf32, #tpu.memory_space<vmem>>, vector<8x768xf32>
    %62 = arith.addf %60, %61 : vector<8x768xf32>
    %c0_60 = arith.constant 0 : index
    %c352 = arith.constant 352 : index
    %63 = vector.load %arg3[%c0_60, %c352] : memref<8x1216xf32, #tpu.memory_space<vmem>>, vector<8x768xf32>
    %64 = arith.addf %62, %63 : vector<8x768xf32>
    %c0_61 = arith.constant 0 : index
    %c368 = arith.constant 368 : index
    %65 = vector.load %arg3[%c0_61, %c368] : memref<8x1216xf32, #tpu.memory_space<vmem>>, vector<8x768xf32>
    %66 = arith.addf %64, %65 : vector<8x768xf32>
    %c0_62 = arith.constant 0 : index
    %c384 = arith.constant 384 : index
    %67 = vector.load %arg3[%c0_62, %c384] : memref<8x1216xf32, #tpu.memory_space<vmem>>, vector<8x768xf32>
    %68 = arith.addf %66, %67 : vector<8x768xf32>
    %c0_63 = arith.constant 0 : index
    %c400 = arith.constant 400 : index
    %69 = vector.load %arg3[%c0_63, %c400] : memref<8x1216xf32, #tpu.memory_space<vmem>>, vector<8x768xf32>
    %70 = arith.addf %68, %69 : vector<8x768xf32>
    %c0_64 = arith.constant 0 : index
    %c416 = arith.constant 416 : index
    %71 = vector.load %arg3[%c0_64, %c416] : memref<8x1216xf32, #tpu.memory_space<vmem>>, vector<8x768xf32>
    %72 = arith.addf %70, %71 : vector<8x768xf32>
    %c0_65 = arith.constant 0 : index
    %c432 = arith.constant 432 : index
    %73 = vector.load %arg3[%c0_65, %c432] : memref<8x1216xf32, #tpu.memory_space<vmem>>, vector<8x768xf32>
    %74 = arith.addf %72, %73 : vector<8x768xf32>
    %c0_66 = arith.constant 0 : index
    %c448 = arith.constant 448 : index
    %75 = vector.load %arg3[%c0_66, %c448] : memref<8x1216xf32, #tpu.memory_space<vmem>>, vector<8x768xf32>
    %76 = arith.addf %74, %75 : vector<8x768xf32>
    %cst = arith.constant 4.000000e-02 : f32
    %77 = vector.broadcast %cst : f32 to vector<8x768xf32>
    %78 = arith.mulf %76, %77 : vector<8x768xf32>
    %c0_67 = arith.constant 0 : index
    %c0_68 = arith.constant 0 : index
    %79 = vector.load %arg2[%c0_67, %c0_68] : memref<8x768xf32, #tpu.memory_space<vmem>>, vector<8x768xf32>
    tpu.vector_store %arg2[%c0_67, %c0_68], %78 {strides = array<i32>} : memref<8x768xf32, #tpu.memory_space<vmem>>, vector<8x768xf32>,
    return
  }
  func.func @transform_0(%arg0: i32) -> (i32, i32) {
    %c0_i32 = arith.constant 0 : i32
    %c0_i32_0 = arith.constant 0 : i32
    return %arg0, %c0_i32 : i32, i32
  }
  func.func @transform_1(%arg0: i32) -> (i32, i32) {
    %c0_i32 = arith.constant 0 : i32
    %c0_i32_0 = arith.constant 0 : i32
    return %arg0, %c0_i32 : i32, i32
  }
}

</mosaic_0001>

<llo_original>
// kernel: tpu_custom_call.1
$region0: #{tpu_custom_call.1}
  #allocation0 [shape = 'u32[]', space=smem, size = 0x4, offset = 0x4, fixed_abs, tag = 'smem constant byte address 0x4 - core index']
  #allocation1 [shape = 'u32[144,128]{1,0:T(1,128)}', space=vmem, size = 0x12000, scoped, tag = 'internal scratch']
  #allocation2 [shape = 'f32[8,1216]{1,0:T(8,128)}', space=vmem, size = 0xa000, scoped, tag = 'scratch operand']
  %s0 = inlined_call_operand.hbm [shape: f32[16,768], index: 0, kind: input, shape index: {}]
  %s1 = inlined_call_operand.hbm [shape: f32[16,768], index: 1, kind: output, shape index: {}]
  %s2 = sld [smem:[#allocation0]]
  $region41: #{tpu_custom_call.1} parent=0
    _
  %s4 = ssub.s32 1, %s2
  %s5 = scalar_select 0, %s4, %s2
  $region1: #{tpu_custom_call.1} parent=0
    #allocation3 [shape = 'u8[49152]{0}', space=vmem, size = 0xc000, scoped, tag = 'input window, operand 0']
    #allocation4 [shape = 's32[2]{0}', space=sflag, size = 0x8, scoped, tag = 'scoped memory for tpu_custom_call.1']
    #allocation5 [shape = 's32[2]{0}', space=sflag, size = 0x8, scoped, tag = 'scoped memory for tpu_custom_call.1']
    #allocation6 [shape = 'u8[49152]{0}', space=vmem, size = 0xc000, scoped, tag = 'output window, operand 0']
    %6 = vsyncpa [#allocation4], 0
    %s7 = scalar_lea.sflag [#allocation4], 1
    %8 = vsyncpa %s7, 0
    %9 = vsyncpa [#allocation5], 0
    %s10 = scalar_lea.sflag [#allocation5], 1
    %11 = vsyncpa %s10, 0
    loop: start=0, step=1, limit=4
    $region2: #{tpu_custom_call.1} parent=1 // loop_pre_header
      _
    $region3: #{tpu_custom_call.1} parent=1 // loop_header
      %s13 = sphi 0, %s17
      %p14 = scmp.ge.s32.totalorder %s13, 4
      %s23 = sphi 0, %s25
      %s26 = sphi 0, %s23
      %s27 = sphi 0, %s26
      %s43 = sphi 0, %s27
      %s49 = sphi 0, %s51
      %s52 = sphi 0, %s49
      %s53 = sphi 0, %s52
      %s69 = sphi 0, %s53
    $region4: #{tpu_custom_call.1} parent=1 // loop_header_branch
      %16 = sbr.rel (%p14) target = $region8
    $region5: #{tpu_custom_call.1} parent=1 // loop_body
      %s18 = ssub.s32 %s13, 1
      %s19 = ssub.s32 %s13, 2
      %s20 = sadd.s32 %s13, 1
      %s21 = ssub.s32 %s13, %s20
      %p22 = scmp.eq.s32.totalorder %s21, 0
      %s24 = sadd.s32 %s23, 1
      %s25 = scalar_select %p22, %s23, %s24
      %p28 = pneg %p22
      %p29 = scmp.eq.s32.totalorder %s13, 1
      %p30 = por %p28, %p29
      %p31 = scmp.ne.s32.totalorder %s23, %s26
      %p32 = scmp.eq.s32.totalorder %s13, 0
      %p33 = por %p31, %p32
      %p34 = scmp.ne.s32.totalorder %s23, %s26
      %p35 = scmp.eq.s32.totalorder %s18, 1
      %p36 = por %p34, %p35
      %p37 = scmp.ne.s32.totalorder %s26, %s27
      %p38 = scmp.eq.s32.totalorder %s18, 0
      %p39 = por %p37, %p38
      %p40 = scmp.ne.s32.totalorder %s26, %s27
      %p41 = scmp.eq.s32.totalorder %s19, 1
      %p42 = por %p40, %p41
      %p44 = scmp.ne.s32.totalorder %s27, %s43
      %p45 = scmp.eq.s32.totalorder %s19, 0
      %p46 = por %p44, %p45
      %s47 = ssub.s32 %s13, %s20
      %p48 = scmp.eq.s32.totalorder %s47, 0
      %s50 = sadd.s32 %s49, 1
      %s51 = scalar_select %p48, %s49, %s50
      %p54 = pneg %p48
      %p55 = scmp.eq.s32.totalorder %s13, 1
      %p56 = por %p54, %p55
      %p57 = scmp.ne.s32.totalorder %s49, %s52
      %p58 = scmp.eq.s32.totalorder %s13, 0
      %p59 = por %p57, %p58
      %p60 = scmp.ne.s32.totalorder %s49, %s52
      %p61 = scmp.eq.s32.totalorder %s18, 1
      %p62 = por %p60, %p61
      %p63 = scmp.ne.s32.totalorder %s52, %s53
      %p64 = scmp.eq.s32.totalorder %s18, 0
      %p65 = por %p63, %p64
      %p66 = scmp.ne.s32.totalorder %s52, %s53
      %p67 = scmp.eq.s32.totalorder %s19, 1
      %p68 = por %p66, %p67
      %p70 = scmp.ne.s32.totalorder %s53, %s69
      %p71 = scmp.eq.s32.totalorder %s19, 0
      %p72 = por %p70, %p71
      %p73 = scmp.le.s32.totalorder 1, %s13
      %p74 = scmp.lt.s32.totalorder %s13, 3
      %p75 = pnand %p73, %p74
      %p76 = pneg %p75
      // Predicated region
      $region9: #{tpu_custom_call.1} parent=5 // pred_check
        _
      $region10: #{tpu_custom_call.1} parent=5 // pred_check_branch
        %78 = sbr.rel (%p75) target = $region12
      $region11: #{tpu_custom_call.1} parent=5 // pred_region
        %s79 = ssub.s32 %s13, 1
      $region12: #{tpu_custom_call.1} parent=5 // pred_fallthru
        _
      %p80 = scmp.lt.s32.totalorder %s13, 2
      // Predicated region
      $region13: #{tpu_custom_call.1} parent=5 // pred_check
        %p81 = pneg %p80
      $region14: #{tpu_custom_call.1} parent=5 // pred_check_branch
        %83 = sbr.rel (%p81) target = $region16
      $region15: #{tpu_custom_call.1} parent=5 // pred_region
        // Predicated region
        $region17: #{tpu_custom_call.1} parent=15 // pred_check
          %p84 = pneg %p33
        $region18: #{tpu_custom_call.1} parent=15 // pred_check_branch
          %86 = sbr.rel (%p84) target = $region20
        $region19: #{tpu_custom_call.1} parent=15 // pred_region
          %s87 = sand.u32 %s23, 1
          %s88 = scalar_lea.sflag [#allocation4], %s87
          %s89 = sand.u32 %s23, 1
          %s90 = smul.addr %s89, 48
          %s91 = scalar_lea.vmem [#allocation3], %s90
          %s93 = ssub.s32 768, 768
          %94 = vsyncadd %s88, %s93
          %s95 = smul.addr %s13, 6
          %s96 = smul.addr %s95, 128
          %s97 = scalar_lea.hbm %s0, %s96
          %s99 = sshll.u32 %s91, 4
          %s100 = int_to_ptr.vmem [resolvable:$true] %s99
          %102 = dma.hbm_to_vmem [thread:$0]  %s97, 768, %s100, %s88
        $region20: #{tpu_custom_call.1} parent=15 // pred_fallthru
          _
      $region16: #{tpu_custom_call.1} parent=5 // pred_fallthru
        _
      %p103 = scmp.le.s32.totalorder 1, %s13
      %p104 = scmp.lt.s32.totalorder %s13, 3
      %p105 = pnand %p103, %p104
      %p106 = pneg %p105
      // Predicated region
      $region21: #{tpu_custom_call.1} parent=5 // pred_check
        _
      $region22: #{tpu_custom_call.1} parent=5 // pred_check_branch
        %108 = sbr.rel (%p105) target = $region24
      $region23: #{tpu_custom_call.1} parent=5 // pred_region
        %s109 = ssub.s32 %s13, 1
        %s110 = sand.u32 %s26, 1
        %s111 = scalar_lea.sflag [#allocation4], %s110
        %s112 = sand.u32 %s26, 1
        %s113 = smul.addr %s112, 48
        %s114 = scalar_lea.vmem [#allocation3], %s113
        // Predicated region
        $region25: #{tpu_custom_call.1} parent=23 // pred_check
          %p115 = pneg %p39
        $region26: #{tpu_custom_call.1} parent=23 // pred_check_branch
          %117 = sbr.rel (%p115) target = $region28
        $region27: #{tpu_custom_call.1} parent=23 // pred_region
          %118 = dma.done %s111, 768
        $region28: #{tpu_custom_call.1} parent=23 // pred_fallthru
          _
        %s119 = sand.u32 %s26, 1
        %s120 = scalar_lea.sflag [#allocation4], %s119
        %s121 = sand.u32 %s26, 1
        %s122 = smul.addr %s121, 48
        %s123 = scalar_lea.vmem [#allocation3], %s122
        %p124 = pneg %p39
        %p125 = pneg %p36
        %p126 = pneg %p65
        %p127 = pneg %p62
        %s128 = sand.u32 %s52, 1
        %s129 = scalar_lea.sflag [#allocation5], %s128
        %s130 = sand.u32 %s52, 1
        %s131 = smul.addr %s130, 48
        %s132 = scalar_lea.vmem [#allocation6], %s131
        %v133 = vld [vmem:[%s114] sm:$0xff]
        %v134 = vld [vmem:[%s114 + $0x8] sm:$0xff]
        %v135 = vld [vmem:[%s114 + $0x10] sm:$0xff]
        %v136 = vld [vmem:[%s114 + $0x18] sm:$0xff]
        %v137 = vld [vmem:[%s114 + $0x20] sm:$0xff]
        %v138 = vld [vmem:[%s114 + $0x28] sm:$0xff]
        %139 = vst [vmem:[#allocation2 + $0x10] sm:$0xff] %v133
        %140 = vst [vmem:[#allocation2 + $0x18] sm:$0xff] %v134
        %141 = vst [vmem:[#allocation2 + $0x20] sm:$0xff] %v135
        %142 = vst [vmem:[#allocation2 + $0x28] sm:$0xff] %v136
        %143 = vst [vmem:[#allocation2 + $0x30] sm:$0xff] %v137
        %144 = vst [vmem:[#allocation2 + $0x38] sm:$0xff] %v138
        %v145 = vld [vmem:[%s114] sm:$0xff]
        %v146 = vld [vmem:[%s114 + $0x28] sm:$0xff]
        %148 = vrot.lane.b32.xlu0 %v145, 64
        %v149 = vpop.permute.xlu0 %148
        %vm151 = vcmask 654848
        %152 = vst.msk [vmem:[#allocation2] sm:$0xff] %vm151, %v149
        %154 = vrot.lane.b32.xlu0 %v146, 16
        %v155 = vpop.permute.xlu0 %154
        %vm157 = vcmask 130048
        %158 = vst.msk [vmem:[#allocation2 + $0x40] sm:$0xff] %vm157, %v155
        %159 = vrot.lane.b32.xlu0 %v145, 80
        %v160 = vpop.permute.xlu0 %159
        %vm162 = vcmask 786048
        %163 = vst.msk [vmem:[#allocation2] sm:$0xff] %vm162, %v160
        %164 = vrot.lane.b32.xlu0 %v146, 32
        %v165 = vpop.permute.xlu0 %164
        %vm167 = vcmask 261248
        %168 = vst.msk [vmem:[#allocation2 + $0x40] sm:$0xff] %vm167, %v165
        %169 = vrot.lane.b32.xlu0 %v145, 96
        %v170 = vpop.permute.xlu0 %169
        %vm172 = vcmask 917248
        %173 = vst.msk [vmem:[#allocation2] sm:$0xff] %vm172, %v170
        %174 = vrot.lane.b32.xlu0 %v146, 48
        %v175 = vpop.permute.xlu0 %174
        %vm177 = vcmask 392448
        %178 = vst.msk [vmem:[#allocation2 + $0x40] sm:$0xff] %vm177, %v175
        %179 = vrot.lane.b32.xlu0 %v145, 112
        %v180 = vpop.permute.xlu0 %179
        %vm182 = vcmask 1048448
        %183 = vst.msk [vmem:[#allocation2] sm:$0xff] %vm182, %v180
        %184 = vrot.lane.b32.xlu0 %v146, 64
        %v185 = vpop.permute.xlu0 %184
        %vm187 = vcmask 523648
        %188 = vst.msk [vmem:[#allocation2 + $0x40] sm:$0xff] %vm187, %v185
        %189 = vst.msk [vmem:[#allocation2 + $0x8] sm:$0xff] %vm157, %v145
        %190 = vrot.lane.b32.xlu0 %v146, 80
        %v191 = vpop.permute.xlu0 %190
        %193 = vst.msk [vmem:[#allocation2 + $0x40] sm:$0xff] %vm151, %v191
        %194 = vrot.lane.b32.xlu0 %v145, 16
        %v195 = vpop.permute.xlu0 %194
        %197 = vst.msk [vmem:[#allocation2 + $0x8] sm:$0xff] %vm167, %v195
        %198 = vrot.lane.b32.xlu0 %v146, 96
        %v199 = vpop.permute.xlu0 %198
        %201 = vst.msk [vmem:[#allocation2 + $0x40] sm:$0xff] %vm162, %v199
        %202 = vrot.lane.b32.xlu0 %v145, 32
        %v203 = vpop.permute.xlu0 %202
        %205 = vst.msk [vmem:[#allocation2 + $0x8] sm:$0xff] %vm177, %v203
        %206 = vrot.lane.b32.xlu0 %v146, 112
        %v207 = vpop.permute.xlu0 %206
        %209 = vst.msk [vmem:[#allocation2 + $0x40] sm:$0xff] %vm172, %v207
        %210 = vrot.lane.b32.xlu0 %v145, 48
        %v211 = vpop.permute.xlu0 %210
        %213 = vst.msk [vmem:[#allocation2 + $0x8] sm:$0xff] %vm187, %v211
        %214 = vst.msk [vmem:[#allocation2 + $0x40] sm:$0xff] %vm182, %v146
        %215 = vst.msk [vmem:[#allocation2 + $0x8] sm:$0xff] %vm151, %v149
        %216 = vst.msk [vmem:[#allocation2 + $0x48] sm:$0xff] %vm157, %v155
        %217 = vst.msk [vmem:[#allocation2 + $0x8] sm:$0xff] %vm162, %v160
        %218 = vst.msk [vmem:[#allocation2 + $0x48] sm:$0xff] %vm167, %v165
        %219 = vst.msk [vmem:[#allocation2 + $0x8] sm:$0xff] %vm172, %v170
        %220 = vst.msk [vmem:[#allocation2 + $0x48] sm:$0xff] %vm177, %v175
        %221 = vst.msk [vmem:[#allocation2 + $0x8] sm:$0xff] %vm182, %v180
        %222 = vst.msk [vmem:[#allocation2 + $0x48] sm:$0xff] %vm187, %v185
        %v223 = vld [vmem:[#allocation2] sm:$0xff]
        %v224 = vld [vmem:[#allocation2 + $0x8] sm:$0xff]
        %v225 = vld [vmem:[#allocation2 + $0x10] sm:$0xff]
        %v226 = vld [vmem:[#allocation2 + $0x18] sm:$0xff]
        %v227 = vld [vmem:[#allocation2 + $0x20] sm:$0xff]
        %v228 = vld [vmem:[#allocation2 + $0x28] sm:$0xff]
        %v229 = vld [vmem:[#allocation2 + $0x30] sm:$0xff]
        %237 = vrot.lane.b32.xlu0 %v223, 112
        %v238 = vpop.permute.xlu0 %237
        %239 = vrot.lane.b32.xlu0 %v224, 112
        %v240 = vpop.permute.xlu0 %239
        %241 = vrot.lane.b32.xlu0 %v225, 112
        %v242 = vpop.permute.xlu0 %241
        %243 = vrot.lane.b32.xlu0 %v226, 112
        %v244 = vpop.permute.xlu0 %243
        %245 = vrot.lane.b32.xlu0 %v227, 112
        %v246 = vpop.permute.xlu0 %245
        %247 = vrot.lane.b32.xlu0 %v228, 112
        %v248 = vpop.permute.xlu0 %247
        %249 = vrot.lane.b32.xlu0 %v229, 112
        %v250 = vpop.permute.xlu0 %249
        %vm251 = vcmask 916480
        %v252 = vsel %vm251, %v238, %v240
        %v253 = vsel %vm251, %v240, %v242
        %v254 = vsel %vm251, %v242, %v244
        %v255 = vsel %vm251, %v244, %v246
        %v256 = vsel %vm251, %v246, %v248
        %v257 = vsel %vm251, %v248, %v250
        %v265 = vadd.f32 %v223, %v252
        %v266 = vadd.f32 %v224, %v253
        %v267 = vadd.f32 %v225, %v254
        %v268 = vadd.f32 %v226, %v255
        %v269 = vadd.f32 %v227, %v256
        %v270 = vadd.f32 %v228, %v257
        %v271 = vadd.f32 %v229, %v250
        %272 = vrot.lane.b32.xlu0 %v223, 96
        %v273 = vpop.permute.xlu0 %272
        %274 = vrot.lane.b32.xlu0 %v224, 96
        %v275 = vpop.permute.xlu0 %274
        %276 = vrot.lane.b32.xlu0 %v225, 96
        %v277 = vpop.permute.xlu0 %276
        %278 = vrot.lane.b32.xlu0 %v226, 96
        %v279 = vpop.permute.xlu0 %278
        %280 = vrot.lane.b32.xlu0 %v227, 96
        %v281 = vpop.permute.xlu0 %280
        %282 = vrot.lane.b32.xlu0 %v228, 96
        %v283 = vpop.permute.xlu0 %282
        %284 = vrot.lane.b32.xlu0 %v229, 96
        %v285 = vpop.permute.xlu0 %284
        %vm286 = vcmask 785408
        %v287 = vsel %vm286, %v273, %v275
        %v288 = vsel %vm286, %v275, %v277
        %v289 = vsel %vm286, %v277, %v279
        %v290 = vsel %vm286, %v279, %v281
        %v291 = vsel %vm286, %v281, %v283
        %v292 = vsel %vm286, %v283, %v285
        %v300 = vadd.f32 %v265, %v287
        %v301 = vadd.f32 %v266, %v288
        %v302 = vadd.f32 %v267, %v289
        %v303 = vadd.f32 %v268, %v290
        %v304 = vadd.f32 %v269, %v291
        %v305 = vadd.f32 %v270, %v292
        %v306 = vadd.f32 %v271, %v285
        %307 = vrot.lane.b32.xlu0 %v223, 80
        %v308 = vpop.permute.xlu0 %307
        %309 = vrot.lane.b32.xlu0 %v224, 80
        %v310 = vpop.permute.xlu0 %309
        %311 = vrot.lane.b32.xlu0 %v225, 80
        %v312 = vpop.permute.xlu0 %311
        %313 = vrot.lane.b32.xlu0 %v226, 80
        %v314 = vpop.permute.xlu0 %313
        %315 = vrot.lane.b32.xlu0 %v227, 80
        %v316 = vpop.permute.xlu0 %315
        %317 = vrot.lane.b32.xlu0 %v228, 80
        %v318 = vpop.permute.xlu0 %317
        %319 = vrot.lane.b32.xlu0 %v229, 80
        %v320 = vpop.permute.xlu0 %319
        %vm321 = vcmask 654336
        %v322 = vsel %vm321, %v308, %v310
        %v323 = vsel %vm321, %v310, %v312
        %v324 = vsel %vm321, %v312, %v314
        %v325 = vsel %vm321, %v314, %v316
        %v326 = vsel %vm321, %v316, %v318
        %v327 = vsel %vm321, %v318, %v320
        %v335 = vadd.f32 %v300, %v322
        %v336 = vadd.f32 %v301, %v323
        %v337 = vadd.f32 %v302, %v324
        %v338 = vadd.f32 %v303, %v325
        %v339 = vadd.f32 %v304, %v326
        %v340 = vadd.f32 %v305, %v327
        %v341 = vadd.f32 %v306, %v320
        %342 = vrot.lane.b32.xlu0 %v224, 64
        %v343 = vpop.permute.xlu0 %342
        %344 = vrot.lane.b32.xlu0 %v225, 64
        %v345 = vpop.permute.xlu0 %344
        %346 = vrot.lane.b32.xlu0 %v226, 64
        %v347 = vpop.permute.xlu0 %346
        %348 = vrot.lane.b32.xlu0 %v227, 64
        %v349 = vpop.permute.xlu0 %348
        %350 = vrot.lane.b32.xlu0 %v228, 64
        %v351 = vpop.permute.xlu0 %350
        %352 = vrot.lane.b32.xlu0 %v229, 64
        %v353 = vpop.permute.xlu0 %352
        %vm354 = vcmask 523264
        %v355 = vsel %vm354, %v343, %v345
        %v356 = vsel %vm354, %v345, %v347
        %v357 = vsel %vm354, %v347, %v349
        %v358 = vsel %vm354, %v349, %v351
        %v359 = vsel %vm354, %v351, %v353
        %v367 = vadd.f32 %v335, %v343
        %v368 = vadd.f32 %v336, %v355
        %v369 = vadd.f32 %v337, %v356
        %v370 = vadd.f32 %v338, %v357
        %v371 = vadd.f32 %v339, %v358
        %v372 = vadd.f32 %v340, %v359
        %v373 = vadd.f32 %v341, %v353
        %v374 = vld [vmem:[#allocation2 + $0x38] sm:$0xff]
        %376 = vrot.lane.b32.xlu0 %v224, 48
        %v377 = vpop.permute.xlu0 %376
        %378 = vrot.lane.b32.xlu0 %v225, 48
        %v379 = vpop.permute.xlu0 %378
        %380 = vrot.lane.b32.xlu0 %v226, 48
        %v381 = vpop.permute.xlu0 %380
        %382 = vrot.lane.b32.xlu0 %v227, 48
        %v383 = vpop.permute.xlu0 %382
        %384 = vrot.lane.b32.xlu0 %v228, 48
        %v385 = vpop.permute.xlu0 %384
        %386 = vrot.lane.b32.xlu0 %v229, 48
        %v387 = vpop.permute.xlu0 %386
        %388 = vrot.lane.b32.xlu0 %v374, 48
        %v389 = vpop.permute.xlu0 %388
        %vm390 = vcmask 392192
        %v391 = vsel %vm390, %v377, %v379
        %v392 = vsel %vm390, %v379, %v381
        %v393 = vsel %vm390, %v381, %v383
        %v394 = vsel %vm390, %v383, %v385
        %v395 = vsel %vm390, %v385, %v387
        %v396 = vsel %vm390, %v387, %v389
        %v404 = vadd.f32 %v367, %v377
        %v405 = vadd.f32 %v368, %v391
        %v406 = vadd.f32 %v369, %v392
        %v407 = vadd.f32 %v370, %v393
        %v408 = vadd.f32 %v371, %v394
        %v409 = vadd.f32 %v372, %v395
        %v410 = vadd.f32 %v373, %v396
        %411 = vrot.lane.b32.xlu0 %v224, 32
        %v412 = vpop.permute.xlu0 %411
        %413 = vrot.lane.b32.xlu0 %v225, 32
        %v414 = vpop.permute.xlu0 %413
        %415 = vrot.lane.b32.xlu0 %v226, 32
        %v416 = vpop.permute.xlu0 %415
        %417 = vrot.lane.b32.xlu0 %v227, 32
        %v418 = vpop.permute.xlu0 %417
        %419 = vrot.lane.b32.xlu0 %v228, 32
        %v420 = vpop.permute.xlu0 %419
        %421 = vrot.lane.b32.xlu0 %v229, 32
        %v422 = vpop.permute.xlu0 %421
        %423 = vrot.lane.b32.xlu0 %v374, 32
        %v424 = vpop.permute.xlu0 %423
        %vm425 = vcmask 261120
        %v426 = vsel %vm425, %v412, %v414
        %v427 = vsel %vm425, %v414, %v416
        %v428 = vsel %vm425, %v416, %v418
        %v429 = vsel %vm425, %v418, %v420
        %v430 = vsel %vm425, %v420, %v422
        %v431 = vsel %vm425, %v422, %v424
        %v439 = vadd.f32 %v404, %v412
        %v440 = vadd.f32 %v405, %v426
        %v441 = vadd.f32 %v406, %v427
        %v442 = vadd.f32 %v407, %v428
        %v443 = vadd.f32 %v408, %v429
        %v444 = vadd.f32 %v409, %v430
        %v445 = vadd.f32 %v410, %v431
        %446 = vrot.lane.b32.xlu0 %v224, 16
        %v447 = vpop.permute.xlu0 %446
        %448 = vrot.lane.b32.xlu0 %v225, 16
        %v449 = vpop.permute.xlu0 %448
        %450 = vrot.lane.b32.xlu0 %v226, 16
        %v451 = vpop.permute.xlu0 %450
        %452 = vrot.lane.b32.xlu0 %v227, 16
        %v453 = vpop.permute.xlu0 %452
        %454 = vrot.lane.b32.xlu0 %v228, 16
        %v455 = vpop.permute.xlu0 %454
        %456 = vrot.lane.b32.xlu0 %v229, 16
        %v457 = vpop.permute.xlu0 %456
        %458 = vrot.lane.b32.xlu0 %v374, 16
        %v459 = vpop.permute.xlu0 %458
        %v460 = vsel %vm157, %v447, %v449
        %v461 = vsel %vm157, %v449, %v451
        %v462 = vsel %vm157, %v451, %v453
        %v463 = vsel %vm157, %v453, %v455
        %v464 = vsel %vm157, %v455, %v457
        %v465 = vsel %vm157, %v457, %v459
        %v473 = vadd.f32 %v439, %v447
        %v474 = vadd.f32 %v440, %v460
        %v475 = vadd.f32 %v441, %v461
        %v476 = vadd.f32 %v442, %v462
        %v477 = vadd.f32 %v443, %v463
        %v478 = vadd.f32 %v444, %v464
        %v479 = vadd.f32 %v445, %v465
        %v480 = vadd.f32 %v473, %v224
        %v481 = vadd.f32 %v474, %v225
        %v482 = vadd.f32 %v475, %v226
        %v483 = vadd.f32 %v476, %v227
        %v484 = vadd.f32 %v477, %v228
        %v485 = vadd.f32 %v478, %v229
        %v486 = vadd.f32 %v479, %v374
        %487 = vrot.lane.b32.xlu0 %v374, 112
        %v488 = vpop.permute.xlu0 %487
        %v489 = vsel %vm251, %v250, %v488
        %v492 = vadd.f32 %v480, %v253
        %v493 = vadd.f32 %v481, %v254
        %v494 = vadd.f32 %v482, %v255
        %v495 = vadd.f32 %v483, %v256
        %v496 = vadd.f32 %v484, %v257
        %v497 = vadd.f32 %v485, %v489
        %v498 = vadd.f32 %v486, %v488
        %499 = vrot.lane.b32.xlu0 %v374, 96
        %v500 = vpop.permute.xlu0 %499
        %v501 = vsel %vm286, %v285, %v500
        %v504 = vadd.f32 %v492, %v288
        %v505 = vadd.f32 %v493, %v289
        %v506 = vadd.f32 %v494, %v290
        %v507 = vadd.f32 %v495, %v291
        %v508 = vadd.f32 %v496, %v292
        %v509 = vadd.f32 %v497, %v501
        %v510 = vadd.f32 %v498, %v500
        %511 = vrot.lane.b32.xlu0 %v374, 80
        %v512 = vpop.permute.xlu0 %511
        %v513 = vsel %vm321, %v320, %v512
        %v516 = vadd.f32 %v504, %v323
        %v517 = vadd.f32 %v505, %v324
        %v518 = vadd.f32 %v506, %v325
        %v519 = vadd.f32 %v507, %v326
        %v520 = vadd.f32 %v508, %v327
        %v521 = vadd.f32 %v509, %v513
        %v522 = vadd.f32 %v510, %v512
        %523 = vrot.lane.b32.xlu0 %v374, 64
        %v524 = vpop.permute.xlu0 %523
        %v525 = vsel %vm354, %v353, %v524
        %v529 = vadd.f32 %v516, %v345
        %v530 = vadd.f32 %v517, %v356
        %v531 = vadd.f32 %v518, %v357
        %v532 = vadd.f32 %v519, %v358
        %v533 = vadd.f32 %v520, %v359
        %v534 = vadd.f32 %v521, %v525
        %v535 = vadd.f32 %v522, %v524
        %v536 = vld [vmem:[#allocation2 + $0x40] sm:$0xff]
        %538 = vrot.lane.b32.xlu0 %v536, 48
        %v539 = vpop.permute.xlu0 %538
        %v540 = vsel %vm390, %v389, %v539
        %v543 = vadd.f32 %v529, %v379
        %v544 = vadd.f32 %v530, %v392
        %v545 = vadd.f32 %v531, %v393
        %v546 = vadd.f32 %v532, %v394
        %v547 = vadd.f32 %v533, %v395
        %v548 = vadd.f32 %v534, %v396
        %v549 = vadd.f32 %v535, %v540
        %550 = vrot.lane.b32.xlu0 %v536, 32
        %v551 = vpop.permute.xlu0 %550
        %v552 = vsel %vm425, %v424, %v551
        %v555 = vadd.f32 %v543, %v414
        %v556 = vadd.f32 %v544, %v427
        %v557 = vadd.f32 %v545, %v428
        %v558 = vadd.f32 %v546, %v429
        %v559 = vadd.f32 %v547, %v430
        %v560 = vadd.f32 %v548, %v431
        %v561 = vadd.f32 %v549, %v552
        %562 = vrot.lane.b32.xlu0 %v536, 16
        %v563 = vpop.permute.xlu0 %562
        %v564 = vsel %vm157, %v459, %v563
        %v567 = vadd.f32 %v555, %v449
        %v568 = vadd.f32 %v556, %v461
        %v569 = vadd.f32 %v557, %v462
        %v570 = vadd.f32 %v558, %v463
        %v571 = vadd.f32 %v559, %v464
        %v572 = vadd.f32 %v560, %v465
        %v573 = vadd.f32 %v561, %v564
        %v574 = vadd.f32 %v567, %v225
        %v575 = vadd.f32 %v568, %v226
        %v576 = vadd.f32 %v569, %v227
        %v577 = vadd.f32 %v570, %v228
        %v578 = vadd.f32 %v571, %v229
        %v579 = vadd.f32 %v572, %v374
        %v580 = vadd.f32 %v573, %v536
        %581 = vrot.lane.b32.xlu0 %v536, 112
        %v582 = vpop.permute.xlu0 %581
        %v583 = vsel %vm251, %v488, %v582
        %v586 = vadd.f32 %v574, %v254
        %v587 = vadd.f32 %v575, %v255
        %v588 = vadd.f32 %v576, %v256
        %v589 = vadd.f32 %v577, %v257
        %v590 = vadd.f32 %v578, %v489
        %v591 = vadd.f32 %v579, %v583
        %v592 = vadd.f32 %v580, %v582
        %593 = vrot.lane.b32.xlu0 %v536, 96
        %v594 = vpop.permute.xlu0 %593
        %v595 = vsel %vm286, %v500, %v594
        %v598 = vadd.f32 %v586, %v289
        %v599 = vadd.f32 %v587, %v290
        %v600 = vadd.f32 %v588, %v291
        %v601 = vadd.f32 %v589, %v292
        %v602 = vadd.f32 %v590, %v501
        %v603 = vadd.f32 %v591, %v595
        %v604 = vadd.f32 %v592, %v594
        %605 = vrot.lane.b32.xlu0 %v536, 80
        %v606 = vpop.permute.xlu0 %605
        %v607 = vsel %vm321, %v512, %v606
        %v610 = vadd.f32 %v598, %v324
        %v611 = vadd.f32 %v599, %v325
        %v612 = vadd.f32 %v600, %v326
        %v613 = vadd.f32 %v601, %v327
        %v614 = vadd.f32 %v602, %v513
        %v615 = vadd.f32 %v603, %v607
        %v616 = vadd.f32 %v604, %v606
        %617 = vrot.lane.b32.xlu0 %v536, 64
        %v618 = vpop.permute.xlu0 %617
        %v619 = vsel %vm354, %v524, %v618
        %v623 = vadd.f32 %v610, %v347
        %v624 = vadd.f32 %v611, %v357
        %v625 = vadd.f32 %v612, %v358
        %v626 = vadd.f32 %v613, %v359
        %v627 = vadd.f32 %v614, %v525
        %v628 = vadd.f32 %v615, %v619
        %v629 = vadd.f32 %v616, %v618
        %v630 = vld [vmem:[#allocation2 + $0x48] sm:$0xff]
        %632 = vrot.lane.b32.xlu0 %v630, 48
        %v633 = vpop.permute.xlu0 %632
        %v634 = vsel %vm390, %v539, %v633
        %v637 = vadd.f32 %v623, %v381
        %v638 = vadd.f32 %v624, %v393
        %v639 = vadd.f32 %v625, %v394
        %v640 = vadd.f32 %v626, %v395
        %v641 = vadd.f32 %v627, %v396
        %v642 = vadd.f32 %v628, %v540
        %v643 = vadd.f32 %v629, %v634
        %644 = vrot.lane.b32.xlu0 %v630, 32
        %v645 = vpop.permute.xlu0 %644
        %v646 = vsel %vm425, %v551, %v645
        %v649 = vadd.f32 %v637, %v416
        %v650 = vadd.f32 %v638, %v428
        %v651 = vadd.f32 %v639, %v429
        %v652 = vadd.f32 %v640, %v430
        %v653 = vadd.f32 %v641, %v431
        %v654 = vadd.f32 %v642, %v552
        %v655 = vadd.f32 %v643, %v646
        %656 = vrot.lane.b32.xlu0 %v630, 16
        %v657 = vpop.permute.xlu0 %656
        %v658 = vsel %vm157, %v563, %v657
        %v661 = vadd.f32 %v649, %v451
        %v662 = vadd.f32 %v650, %v462
        %v663 = vadd.f32 %v651, %v463
        %v664 = vadd.f32 %v652, %v464
        %v665 = vadd.f32 %v653, %v465
        %v666 = vadd.f32 %v654, %v564
        %v667 = vadd.f32 %v655, %v658
        %v668 = vadd.f32 %v661, %v226
        %v669 = vadd.f32 %v662, %v227
        %v670 = vadd.f32 %v663, %v228
        %v671 = vadd.f32 %v664, %v229
        %v672 = vadd.f32 %v665, %v374
        %v673 = vadd.f32 %v666, %v536
        %v674 = vadd.f32 %v667, %v630
        %v675 = vmul.f32 %v668, 0.04
        %v676 = vmul.f32 %v669, 0.04
        %v677 = vmul.f32 %v670, 0.04
        %v678 = vmul.f32 %v671, 0.04
        %v679 = vmul.f32 %v672, 0.04
        %v680 = vmul.f32 %v673, 0.04
        %v681 = vmul.f32 %v674, 0.04
        %689 = vrot.lane.b32.xlu0 %v675, 64
        %v690 = vpop.permute.xlu0 %689
        %691 = vrot.lane.b32.xlu0 %v676, 64
        %v692 = vpop.permute.xlu0 %691
        %693 = vrot.lane.b32.xlu0 %v677, 64
        %v694 = vpop.permute.xlu0 %693
        %695 = vrot.lane.b32.xlu0 %v678, 64
        %v696 = vpop.permute.xlu0 %695
        %697 = vrot.lane.b32.xlu0 %v679, 64
        %v698 = vpop.permute.xlu0 %697
        %699 = vrot.lane.b32.xlu0 %v680, 64
        %v700 = vpop.permute.xlu0 %699
        %701 = vrot.lane.b32.xlu0 %v681, 64
        %v702 = vpop.permute.xlu0 %701
        %v703 = vsel %vm354, %v690, %v692
        %v704 = vsel %vm354, %v692, %v694
        %v705 = vsel %vm354, %v694, %v696
        %v706 = vsel %vm354, %v696, %v698
        %v707 = vsel %vm354, %v698, %v700
        %v708 = vsel %vm354, %v700, %v702
        %715 = vst [vmem:[%s132] sm:$0xff] %v703
        %716 = vst [vmem:[%s132 + $0x8] sm:$0xff] %v704
        %717 = vst [vmem:[%s132 + $0x10] sm:$0xff] %v705
        %718 = vst [vmem:[%s132 + $0x18] sm:$0xff] %v706
        %719 = vst [vmem:[%s132 + $0x20] sm:$0xff] %v707
        %720 = vst [vmem:[%s132 + $0x28] sm:$0xff] %v708
        %s721 = sand.u32 %s52, 1
        %s722 = scalar_lea.sflag [#allocation5], %s721
        %s723 = sand.u32 %s52, 1
        %s724 = smul.addr %s723, 48
        %s725 = scalar_lea.vmem [#allocation6], %s724
        // Predicated region
        $region29: #{tpu_custom_call.1} parent=23 // pred_check
          %p726 = pneg %p62
        $region30: #{tpu_custom_call.1} parent=23 // pred_check_branch
          %728 = sbr.rel (%p726) target = $region32
        $region31: #{tpu_custom_call.1} parent=23 // pred_region
          %s730 = ssub.s32 768, 768
          %731 = vsyncadd %s722, %s730
          %s732 = smul.addr %s18, 6
          %s733 = smul.addr %s732, 128
          %s734 = scalar_lea.hbm %s1, %s733
          %s736 = sshll.u32 %s725, 4
          %s737 = int_to_ptr.vmem [resolvable:$true] %s736
          %739 = dma.vmem_to_hbm [thread:$0]  %s737, 768, %s734, %s722
        $region32: #{tpu_custom_call.1} parent=23 // pred_fallthru
          _
      $region24: #{tpu_custom_call.1} parent=5 // pred_fallthru
        _
      %p740 = scmp.le.s32.totalorder 2, %s13
      // Predicated region
      $region33: #{tpu_custom_call.1} parent=5 // pred_check
        %p741 = pneg %p740
      $region34: #{tpu_custom_call.1} parent=5 // pred_check_branch
        %743 = sbr.rel (%p741) target = $region36
      $region35: #{tpu_custom_call.1} parent=5 // pred_region
        %s744 = ssub.s32 %s13, 2
        // Predicated region
        $region37: #{tpu_custom_call.1} parent=35 // pred_check
          %p745 = pneg %p68
        $region38: #{tpu_custom_call.1} parent=35 // pred_check_branch
          %747 = sbr.rel (%p745) target = $region40
        $region39: #{tpu_custom_call.1} parent=35 // pred_region
          %s748 = sand.u32 %s53, 1
          %s749 = scalar_lea.sflag [#allocation5], %s748
          %s750 = sand.u32 %s53, 1
          %s751 = smul.addr %s750, 48
          %s752 = scalar_lea.vmem [#allocation6], %s751
          %753 = dma.done %s749, 768
        $region40: #{tpu_custom_call.1} parent=35 // pred_fallthru
          _
      $region36: #{tpu_custom_call.1} parent=5 // pred_fallthru
        _
    $region6: #{tpu_custom_call.1} parent=1 // loop_footer
      %s17 = sadd.s32 1, %s13
    $region7: #{tpu_custom_call.1} parent=1 // loop_footer_branch
      %12 = sbr.rel target = $region3
    $region8: #{tpu_custom_call.1} parent=1 // loop_exit
      _
    %754 = vsyncpa [#allocation4], 1
    %s755 = scalar_lea.sflag [#allocation4], 1
    %756 = vsyncpa %s755, 1
    %757 = vsyncpa [#allocation5], 1
    %s758 = scalar_lea.sflag [#allocation5], 1
    %759 = vsyncpa %s758, 1

</llo_original>
